<compile_context>
chip_gen: v6e
topology: v6e:2x2x1
jax: 0.10.0
libtpu: 0.0.40
codegen_flags: <defaults>
</compile_context>

<pallas_src>
import math

import jax
import jax.numpy as jnp
from jax.experimental import pallas as pl
from jax.experimental.pallas import tpu as pltpu

HIDDEN = 16  # st_net output feature dim expected by the pred heads


# ----------------------------------------------------------------------------
# Kernel: one fused affine map  (2, Din) @ (Din, tm)  + bias, exp on row 1
# ----------------------------------------------------------------------------
def _causal_lp_kernel(x_ref, wt_ref, bias_ref, mu_ref, b_ref):
    """One grid step.

    x_ref   : (Din, tm) VMEM  -- x rows, transposed so M sits on the lane axis
    wt_ref  : (2, Din)  VMEM  -- folded weights, row 0 = mu, row 1 = log_b
    bias_ref: (2,)      SMEM  -- folded biases (scalars)
    mu_ref  : (1, tm)   VMEM  -- mu output row
    b_ref   : (1, tm)   VMEM  -- b = exp(log_b) output row
    """
    # Single MXU pass, f32 accumulation.
    y = jnp.dot(wt_ref[...], x_ref[...], preferred_element_type=jnp.float32)  # (2, tm)
    mu_ref[...] = (y[0:1, :] + bias_ref[0]).astype(mu_ref.dtype)
    # exp goes to the (otherwise idle) EUP slot.
    b_ref[...] = jnp.exp(y[1:2, :] + bias_ref[1]).astype(b_ref.dtype)


# ----------------------------------------------------------------------------
# Wrapper
# ----------------------------------------------------------------------------
def causal_model_lp_forward(x, params, *, tm=65536):
    """x: (B, T, N, D_in) float32 -> (mu, b) each (B, T, N, 1)."""
    B, T, N, Din = x.shape
    M = B * T * N

    w_st, b_st, w_mu, b_mu, w_lb, b_lb = params

    # Fold linear st_net + both 16->1 heads into a single affine map Din -> 2.
    w_heads = jnp.concatenate([w_mu, w_lb], axis=1)                     # (16, 2)
    b_heads = jnp.concatenate([b_mu, b_lb], axis=1)                     # (1, 2)
    wt = jnp.dot(w_st, w_heads, precision="highest").T                  # (2, Din)
    bias = (jnp.dot(b_st, w_heads, precision="highest") + b_heads).reshape(2)

    # Layout plumbing: put the large row axis on lanes (lane-dense load/store).
    xt = x.reshape(M, Din).T                                            # (Din, M)

    # Tile size: cover M in one step when small, otherwise large lane tiles so
    # per-step DMA time dwarfs the ~0.35us grid-step overhead.  x tile is
    # bounded to ~2 MiB of VMEM (double-buffered by Pallas).
    m_pad = pl.cdiv(M, 128) * 128
    tm_budget = max(128, (((2 * 1024 * 1024) // (max(Din, 1) * 4)) // 128) * 128)
    tm = max(128, min((tm // 128) * 128, tm_budget, m_pad))
    grid = (pl.cdiv(M, tm),)  # ragged last tile handled by Pallas masking

    # Explicit VMEM budget: double-buffered x tile + two output tiles (+ tiny
    # weights), generous headroom, capped at v7x's 64 MiB physical VMEM.
    need = 2 * (Din * tm + 2 * tm) * 4 + 2 * Din * 4
    vmem_limit = int(min(64 * 1024 * 1024, max(32 * 1024 * 1024, 4 * need)))

    mu_flat, b_flat = pl.pallas_call(
        _causal_lp_kernel,
        out_shape=(jax.ShapeDtypeStruct((1, M), jnp.float32),
                   jax.ShapeDtypeStruct((1, M), jnp.float32)),
        grid_spec=pltpu.PrefetchScalarGridSpec(
            num_scalar_prefetch=0,
            grid=grid,
            in_specs=[
                pl.BlockSpec((Din, tm), lambda i: (0, i)),             # x^T tile
                pl.BlockSpec((2, Din), lambda i: (0, 0)),              # folded W^T
                pl.BlockSpec(memory_space=pltpu.MemorySpace.SMEM),     # folded bias
            ],
            out_specs=[
                pl.BlockSpec((1, tm), lambda i: (0, i)),               # mu
                pl.BlockSpec((1, tm), lambda i: (0, i)),               # b
            ],
        ),
        compiler_params=pltpu.CompilerParams(
            dimension_semantics=("parallel",),
            vmem_limit_bytes=vmem_limit,
        ),
        cost_estimate=pl.CostEstimate(
            flops=2 * M * Din * 2,
            transcendentals=M,
            bytes_accessed=(M * Din + 2 * M + 2 * Din + 2) * 4,
        ),
    )(xt, wt, bias)

    # (1, M) -> (B, T, N, 1) is a free, contiguous reshape (no slice pass).
    return mu_flat.reshape(B, T, N, 1), b_flat.reshape(B, T, N, 1)


# ----------------------------------------------------------------------------
# Deterministic parameter initialization (PyTorch-Linear-style uniform bounds)
# ----------------------------------------------------------------------------
def init_params(key, d_in):
    ks = jax.random.split(key, 6)

    def linear_init(kw, kb, fan_in, fan_out):
        bound = 1.0 / math.sqrt(fan_in)
        w = jax.random.uniform(kw, (fan_in, fan_out), jnp.float32, -bound, bound)
        b = jax.random.uniform(kb, (1, fan_out), jnp.float32, -bound, bound)
        return w, b

    w_st, b_st = linear_init(ks[0], ks[1], d_in, HIDDEN)     # synthetic st_net
    w_mu, b_mu = linear_init(ks[2], ks[3], HIDDEN, 1)        # pred_head_mu
    w_lb, b_lb = linear_init(ks[4], ks[5], HIDDEN, 1)        # pred_head_log_b
    return (w_st, b_st, w_mu, b_mu, w_lb, b_lb)


def reference_forward(x, params):
    w_st, b_st, w_mu, b_mu, w_lb, b_lb = params
    h = jnp.dot(x, w_st, precision="highest") + b_st
    mu = jnp.dot(h, w_mu, precision="highest") + b_mu
    b = jnp.exp(jnp.dot(h, w_lb, precision="highest") + b_lb)
    return mu, b


if __name__ == "__main__":
    # x: (batch_size=2, input_window=8, num_nodes=16, feature_dim_in=4)
    B, T, N, Din = 2, 8, 16, 4
    key = jax.random.PRNGKey(0)
    kx, kp = jax.random.split(key)

    x = jax.random.normal(kx, (B, T, N, Din), dtype=jnp.float32)
    params = init_params(kp, Din)

    mu, b = causal_model_lp_forward(x, params)
    mu, b = jax.block_until_ready((mu, b))

    mu_ref, b_ref = reference_forward(x, params)
    assert mu.shape == (B, T, N, 1) and b.shape == (B, T, N, 1)
    assert jnp.allclose(mu, mu_ref, atol=1e-5, rtol=1e-5)
    assert jnp.allclose(b, b_ref, atol=1e-5, rtol=1e-5)

    # Ragged case: M = 2*5*13 = 130 is not a multiple of the 128-lane tile,
    # exercising the pad-free cdiv grid and masked edge writeback.
    x2 = jax.random.normal(jax.random.PRNGKey(1), (2, 5, 13, Din), dtype=jnp.float32)
    mu2, b2 = jax.block_until_ready(causal_model_lp_forward(x2, params))
    mu2_ref, b2_ref = reference_forward(x2, params)
    assert mu2.shape == (2, 5, 13, 1) and b2.shape == (2, 5, 13, 1)
    assert jnp.allclose(mu2, mu2_ref, atol=1e-5, rtol=1e-5)
    assert jnp.allclose(b2, b2_ref, atol=1e-5, rtol=1e-5)

    print("KERNEL_OK")
</pallas_src>

<mosaic_0001>
module attributes {stable_mosaic.version = 11 : i64} {
  func.func @_causal_lp_kernel(%arg0: i32, %arg1: memref<4x256xf32, #tpu.memory_space<vmem>>, %arg2: memref<2x4xf32, #tpu.memory_space<vmem>>, %arg3: memref<2xf32, #tpu.memory_space<smem>>, %arg4: memref<1x256xf32, #tpu.memory_space<vmem>>, %arg5: memref<1x256xf32, #tpu.memory_space<vmem>>) attributes {dimension_semantics = [#tpu.dimension_semantics<parallel>], iteration_bounds = array<i64: 1>, scalar_prefetch = 0 : i64, scratch_operands = 0 : i64, tpu.core_type = #tpu.core_type<tc>, window_params = [{transform_indices = @transform_0, window_bounds = array<i64: 4, 256>}, {pipeline_mode = #tpu.pipeline_mode<synchronous>, transform_indices = @transform_1, window_bounds = array<i64: 2, 4>}, {transform_indices = @transform_2, window_bounds = array<i64: 2>}, {transform_indices = @transform_3, window_bounds = array<i64: 1, 256>}, {transform_indices = @transform_4, window_bounds = array<i64: 1, 256>}]} {
    %c0 = arith.constant 0 : index
    %c0_0 = arith.constant 0 : index
    %0 = vector.load %arg2[%c0, %c0_0] : memref<2x4xf32, #tpu.memory_space<vmem>>, vector<2x4xf32>
    %c0_1 = arith.constant 0 : index
    %c0_2 = arith.constant 0 : index
    %1 = vector.load %arg1[%c0_1, %c0_2] : memref<4x256xf32, #tpu.memory_space<vmem>>, vector<4x256xf32>
    %cst = arith.constant dense<0.000000e+00> : vector<2x256xf32>
    %2 = tpu.matmul %0, %1, %cst {dimension_numbers = #tpu.dot_dimension_numbers<[1], [0], [0], [1], [0, 0, 1, 1], [], []>} : vector<2x4xf32>, vector<4x256xf32>, vector<2x256xf32> -> vector<2x256xf32>
    %3 = vector.extract_strided_slice %2 {offsets = [0, 0], sizes = [1, 256], strides = [1, 1]} : vector<2x256xf32> to vector<1x256xf32>
    %c0_3 = arith.constant 0 : index
    %4 = memref.load %arg3[%c0_3] : memref<2xf32, #tpu.memory_space<smem>>
    %5 = vector.broadcast %4 : f32 to vector<1x256xf32>
    %6 = arith.addf %3, %5 : vector<1x256xf32>
    %c0_4 = arith.constant 0 : index
    %c0_5 = arith.constant 0 : index
    %7 = vector.load %arg4[%c0_4, %c0_5] : memref<1x256xf32, #tpu.memory_space<vmem>>, vector<1x256xf32>
    tpu.vector_store %arg4[%c0_4, %c0_5], %6 {strides = array<i32>} : memref<1x256xf32, #tpu.memory_space<vmem>>, vector<1x256xf32>,
    %8 = vector.extract_strided_slice %2 {offsets = [1, 0], sizes = [1, 256], strides = [1, 1]} : vector<2x256xf32> to vector<1x256xf32>
    %c1 = arith.constant 1 : index
    %9 = memref.load %arg3[%c1] : memref<2xf32, #tpu.memory_space<smem>>
    %10 = vector.broadcast %9 : f32 to vector<1x256xf32>
    %11 = arith.addf %8, %10 : vector<1x256xf32>
    %12 = math.exp %11 : vector<1x256xf32>
    %c0_6 = arith.constant 0 : index
    %c0_7 = arith.constant 0 : index
    %13 = vector.load %arg5[%c0_6, %c0_7] : memref<1x256xf32, #tpu.memory_space<vmem>>, vector<1x256xf32>
    tpu.vector_store %arg5[%c0_6, %c0_7], %12 {strides = array<i32>} : memref<1x256xf32, #tpu.memory_space<vmem>>, vector<1x256xf32>,
    return
  }
  func.func @transform_0(%arg0: i32) -> (i32, i32) {
    %c0_i32 = arith.constant 0 : i32
    %c0_i32_0 = arith.constant 0 : i32
    return %c0_i32, %arg0 : i32, i32
  }
  func.func @transform_1(%arg0: i32) -> (i32, i32) {
    %c0_i32 = arith.constant 0 : i32
    %c0_i32_0 = arith.constant 0 : i32
    %c0_i32_1 = arith.constant 0 : i32
    return %c0_i32, %c0_i32_0 : i32, i32
  }
  func.func @transform_2(%arg0: i32) -> i32 {
    %c0_i32 = arith.constant 0 : i32
    %c0_i32_0 = arith.constant 0 : i32
    return %c0_i32 : i32
  }
  func.func @transform_3(%arg0: i32) -> (i32, i32) {
    %c0_i32 = arith.constant 0 : i32
    %c0_i32_0 = arith.constant 0 : i32
    return %c0_i32, %arg0 : i32, i32
  }
  func.func @transform_4(%arg0: i32) -> (i32, i32) {
    %c0_i32 = arith.constant 0 : i32
    %c0_i32_0 = arith.constant 0 : i32
    return %c0_i32, %arg0 : i32, i32
  }
}

</mosaic_0001>

<llo_original>
// kernel: tpu_custom_call.1
$region0: #{tpu_custom_call.1}
  #allocation0 [shape = 'u32[]', space=smem, size = 0x4, offset = 0x4, fixed_abs, tag = 'smem constant byte address 0x4 - core index']
  #allocation1 [shape = 'u32[144,128]{1,0:T(1,128)}', space=vmem, size = 0x12000, scoped, tag = 'internal scratch']
  %s0 = inlined_call_operand.hbm [shape: f32[4,256], index: 0, kind: input, shape index: {}]
  %s1 = inlined_call_operand.hbm [shape: f32[2,4], index: 1, kind: input, shape index: {}]
  %s2 = inlined_call_operand.vmem [shape: f32[2], index: 2, kind: input, shape index: {}]
  %s3 = inlined_call_operand.hbm [shape: f32[1,256], index: 3, kind: output, shape index: {0}]
  %s4 = inlined_call_operand.hbm [shape: f32[1,256], index: 4, kind: output, shape index: {1}]
  %5 = xla_tuple %s3, %s4
  %s6 = sld [smem:[#allocation0]]
  $region42: #{tpu_custom_call.1} parent=0
    _
  %s8 = ssub.s32 1, %s6
  %s9 = scalar_select 0, %s8, %s6
  $region1: #{tpu_custom_call.1} parent=0
    #allocation2 [shape = 'u8[4096]{0}', space=vmem, size = 0x1000, scoped, tag = 'input window, operand 0, single buffered']
    #allocation3 [shape = 's32[1]{0}', space=sflag, size = 0x4, scoped, tag = 'scoped memory for tpu_custom_call.1']
    #allocation4 [shape = 's32[1]{0}', space=sflag, size = 0x4, scoped, tag = 'scoped memory for tpu_custom_call.1']
    #allocation5 [shape = 's32[1]{0}', space=sflag, size = 0x4, scoped, tag = 'scoped memory for tpu_custom_call.1']
    #allocation6 [shape = 'u8[1024]{0}', space=vmem, size = 0x400, scoped, tag = 'input window, operand 1, single buffered']
    #allocation7 [shape = 's32[1]{0}', space=sflag, size = 0x4, scoped, tag = 'scoped memory for tpu_custom_call.1']
    #allocation8 [shape = 'u8[512]{0}', space=smem, size = 0x200, scoped, tag = 'input window, operand 2, single buffered']
    #allocation9 [shape = 'u8[1024]{0}', space=vmem, size = 0x400, scoped, tag = 'output window, operand 0, single buffered']
    #allocation10 [shape = 'u8[1024]{0}', space=vmem, size = 0x400, scoped, tag = 'output window, operand 1, single buffered']
    #allocation11 [shape = 's32[1]{0}', space=sflag, size = 0x4, scoped, tag = 'scoped memory for tpu_custom_call.1']
    %10 = vsyncpa [#allocation3], 0
    %11 = vsyncpa [#allocation7], 0
    %12 = vsyncpa [#allocation5], 0
    %13 = vsyncpa [#allocation4], 0
    %14 = vsyncpa [#allocation11], 0
    // Predicated region
    $region2: #{tpu_custom_call.1} parent=1 // pred_check
      _
    $region3: #{tpu_custom_call.1} parent=1 // pred_check_branch
      %16 = sbr.rel (0) target = $region5
    $region4: #{tpu_custom_call.1} parent=1 // pred_region
      %s18 = ssub.s32 128, 128
      %19 = vsyncadd [#allocation3], %s18
      %s21 = sshll.u32 [#allocation2], 4
      %s22 = int_to_ptr.vmem [resolvable:$true] %s21
      %24 = dma.hbm_to_vmem [thread:$0]  %s0, 128, %s22, [#allocation3]
    $region5: #{tpu_custom_call.1} parent=1 // pred_fallthru
      _
    // Predicated region
    $region6: #{tpu_custom_call.1} parent=1 // pred_check
      _
    $region7: #{tpu_custom_call.1} parent=1 // pred_check_branch
      %26 = sbr.rel (0) target = $region9
    $region8: #{tpu_custom_call.1} parent=1 // pred_region
      %s28 = ssub.s32 32, 32
      %29 = vsyncadd [#allocation7], %s28
      %s31 = sshll.u32 [#allocation6], 4
      %s32 = int_to_ptr.vmem [resolvable:$true] %s31
      %34 = dma.hbm_to_vmem [thread:$0]  %s1, 32, %s32, [#allocation7]
    $region9: #{tpu_custom_call.1} parent=1 // pred_fallthru
      _
    // Predicated region
    $region10: #{tpu_custom_call.1} parent=1 // pred_check
      _
    $region11: #{tpu_custom_call.1} parent=1 // pred_check_branch
      %36 = sbr.rel (0) target = $region13
    $region12: #{tpu_custom_call.1} parent=1 // pred_region
      %s38 = ssub.s32 16, 16
      %39 = vsyncadd [#allocation5], %s38
      %s41 = sshll.u32 %s2, 4
      %s42 = int_to_ptr.vmem [resolvable:$true] %s41
      %44 = dma.vmem_to_smem %s42, 16, [#allocation8], [#allocation5]
    $region13: #{tpu_custom_call.1} parent=1 // pred_fallthru
      _
    // Predicated region
    $region14: #{tpu_custom_call.1} parent=1 // pred_check
      _
    $region15: #{tpu_custom_call.1} parent=1 // pred_check_branch
      %46 = sbr.rel (0) target = $region17
    $region16: #{tpu_custom_call.1} parent=1 // pred_region
      %47 = dma.done [#allocation3], 128
    $region17: #{tpu_custom_call.1} parent=1 // pred_fallthru
      _
    // Predicated region
    $region18: #{tpu_custom_call.1} parent=1 // pred_check
      _
    $region19: #{tpu_custom_call.1} parent=1 // pred_check_branch
      %49 = sbr.rel (0) target = $region21
    $region20: #{tpu_custom_call.1} parent=1 // pred_region
      %50 = dma.done [#allocation7], 32
    $region21: #{tpu_custom_call.1} parent=1 // pred_fallthru
      _
    // Predicated region
    $region22: #{tpu_custom_call.1} parent=1 // pred_check
      _
    $region23: #{tpu_custom_call.1} parent=1 // pred_check_branch
      %52 = sbr.rel (0) target = $region25
    $region24: #{tpu_custom_call.1} parent=1 // pred_region
      %53 = dma.done [#allocation5], 16
    $region25: #{tpu_custom_call.1} parent=1 // pred_fallthru
      _
    %54 = sfence
    %v55 = vld [vmem:[#allocation6] sm:$0x3]
    %v56 = vld [vmem:[#allocation2] sm:$0xff]
    %v58 = vcombine.high %v56, %v56
    %vm59 = vcmask 31744
    %v61 = vsel %vm59, %v55, 0
    %vm63 = vcmask 1043456
    %v64 = vsel %vm63, %v56, 0
    %v66 = vsel %vm63, %v58, 0
    %68 = vmatprep.subr.mxu0 0.0
    %69 = vmatpush1.msra.mxu0 0.0
    %70 = vmatprep.subr.mxu0 0.0
    %71 = vmatpush1.msra.mxu0 0.0
    %72 = vmatprep.subr.mxu0 0.0
    %73 = vmatpush1.msra.mxu0 0.0
    %74 = vmatprep.subr.mxu0 0.0
    %75 = vmatpush1.msra.mxu0 0.0
    %76 = vmatprep.subr.mxu0 0.0
    %77 = vmatpush1.msra.mxu0 0.0
    %78 = vmatprep.subr.mxu0 0.0
    %79 = vmatpush1.msra.mxu0 0.0
    %80 = vmatprep.subr.mxu0 0.0
    %81 = vmatpush1.msra.mxu0 0.0
    %82 = vmatprep.subr.mxu0 0.0
    %83 = vmatpush1.msra.mxu0 0.0
    %84 = vmatprep.subr.mxu0 0.0
    %85 = vmatpush1.msra.mxu0 0.0
    %86 = vmatprep.subr.mxu0 0.0
    %87 = vmatpush1.msra.mxu0 0.0
    %88 = vmatprep.subr.mxu0 0.0
    %89 = vmatpush1.msra.mxu0 0.0
    %90 = vmatprep.subr.mxu0 0.0
    %91 = vmatpush1.msra.mxu0 0.0
    %92 = vmatprep.subr.mxu0 0.0
    %93 = vmatpush1.msra.mxu0 0.0
    %94 = vmatprep.subr.mxu0 0.0
    %95 = vmatpush1.msra.mxu0 0.0
    %96 = vmatprep.subr.mxu0 0.0
    %97 = vmatpush1.msra.mxu0 0.0
    %98 = vmatprep.subr.mxu0 %v66
    %99 = vmatpush1.msra.mxu0 %v64
    %100 = vmatprep.subr.mxu0 0.0
    %101 = vmatpush2.msra.mxu0 0.0
    %102 = vmatprep.subr.mxu0 0.0
    %103 = vmatpush2.msra.mxu0 0.0
    %104 = vmatprep.subr.mxu0 0.0
    %105 = vmatpush2.msra.mxu0 0.0
    %106 = vmatprep.subr.mxu0 0.0
    %107 = vmatpush2.msra.mxu0 0.0
    %108 = vmatprep.subr.mxu0 0.0
    %109 = vmatpush2.msra.mxu0 0.0
    %110 = vmatprep.subr.mxu0 0.0
    %111 = vmatpush2.msra.mxu0 0.0
    %112 = vmatprep.subr.mxu0 0.0
    %113 = vmatpush2.msra.mxu0 0.0
    %114 = vmatprep.subr.mxu0 0.0
    %115 = vmatpush2.msra.mxu0 0.0
    %116 = vmatprep.subr.mxu0 0.0
    %117 = vmatpush2.msra.mxu0 0.0
    %118 = vmatprep.subr.mxu0 0.0
    %119 = vmatpush2.msra.mxu0 0.0
    %120 = vmatprep.subr.mxu0 0.0
    %121 = vmatpush2.msra.mxu0 0.0
    %122 = vmatprep.subr.mxu0 0.0
    %123 = vmatpush2.msra.mxu0 0.0
    %124 = vmatprep.subr.mxu0 0.0
    %125 = vmatpush2.msra.mxu0 0.0
    %126 = vmatprep.subr.mxu0 0.0
    %127 = vmatpush2.msra.mxu0 0.0
    %128 = vmatprep.subr.mxu0 0.0
    %129 = vmatpush2.msra.mxu0 0.0
    %130 = vmatprep.subr.mxu0 0.0
    %131 = vmatpush2.msra.mxu0 0.0
    %132 = vmatprep.mubr.f32.mxu0 0.0
    %133 = vmatmul.mubr.f32.gmra.mxu0 %v61
    %v134 = vpop.f32.mrf.mxu0
    %v135 = vadd.f32 0.0, %v134
    %v136 = vpop.f32.mrf.mxu0
    %v137 = vadd.f32 0.0, %v136
    %138 = vdwg.mxu0
    %s139 = sld [smem:[#allocation8]]
    %v140 = vstv %s139
    %v141 = vadd.f32 %v135, %v140
    %v142 = vadd.f32 %v137, %v140
    %v145 = vcombine.low %v141, %v142
    %v147 = vunpack.c.l.s4 1966171168
    %v148 = vunpack.c.0.s8 %v147
    %v149 = vlaneseq
    %v150 = vshrl.u32 %v149, 7
    %v151 = vsub.s32 %v148, %v150
    %v152 = vrot.slane %v145, %v151
    %v154 = vunpack.c.l.s4 1966171168
    %v155 = vunpack.c.0.s8 %v154
    %v156 = vlaneseq
    %v157 = vshrl.u32 %v156, 7
    %v158 = vsub.s32 %v155, %v157
    %v159 = vrot.slane %v152, %v158
    %v161 = vlaneseq
    %vm162 = vcmp.ge.s32.totalorder %v161, 0
    %vm163 = vcmp.lt.s32.totalorder %v161, 256
    %vm164 = vmand %vm162, %vm163
    %165 = vst.msk [vmem:[#allocation9] sm:$0x3] %vm164, %v159
    %s166 = sld [smem:[#allocation8 + $0x1]]
    %v167 = vstv %s166
    %v168 = vadd.f32 %v135, %v167
    %v169 = vadd.f32 %v137, %v167
    %v170 = vmul.f32 %v168, 1.442695
    %v171 = vpow.pop %v170
    %v172 = vmul.f32 %v169, 1.442695
    %v173 = vpow.pop %v172
    %v176 = vcombine.low %v171, %v173
    %v178 = vunpack.c.l.s4 1966171168
    %v179 = vunpack.c.0.s8 %v178
    %v180 = vlaneseq
    %v181 = vshrl.u32 %v180, 7
    %v182 = vsub.s32 %v179, %v181
    %v183 = vrot.slane %v176, %v182
    %v184 = vcombine.high %v183, %v183
    %v186 = vunpack.c.l.s4 1966171168
    %v187 = vunpack.c.0.s8 %v186
    %v188 = vlaneseq
    %v189 = vshrl.u32 %v188, 7
    %v190 = vsub.s32 %v187, %v189
    %v191 = vrot.slane %v184, %v190
    %193 = vst.msk [vmem:[#allocation10] sm:$0x3] %vm164, %v191
    // Predicated region
    $region26: #{tpu_custom_call.1} parent=1 // pred_check
      _
    $region27: #{tpu_custom_call.1} parent=1 // pred_check_branch
      %195 = sbr.rel (0) target = $region29
    $region28: #{tpu_custom_call.1} parent=1 // pred_region
      %s197 = ssub.s32 32, 32
      %198 = vsyncadd [#allocation4], %s197
      %s200 = sshll.u32 [#allocation9], 4
      %s201 = int_to_ptr.vmem [resolvable:$true] %s200
      %203 = dma.vmem_to_hbm [thread:$0]  %s201, 32, %s3, [#allocation4]
    $region29: #{tpu_custom_call.1} parent=1 // pred_fallthru
      _
    // Predicated region
    $region30: #{tpu_custom_call.1} parent=1 // pred_check
      _
    $region31: #{tpu_custom_call.1} parent=1 // pred_check_branch
      %205 = sbr.rel (0) target = $region33
    $region32: #{tpu_custom_call.1} parent=1 // pred_region
      %s207 = ssub.s32 32, 32
      %208 = vsyncadd [#allocation11], %s207
      %s210 = sshll.u32 [#allocation10], 4
      %s211 = int_to_ptr.vmem [resolvable:$true] %s210
      %213 = dma.vmem_to_hbm [thread:$0]  %s211, 32, %s4, [#allocation11]
    $region33: #{tpu_custom_call.1} parent=1 // pred_fallthru
      _
    // Predicated region
    $region34: #{tpu_custom_call.1} parent=1 // pred_check
      _
    $region35: #{tpu_custom_call.1} parent=1 // pred_check_branch
      %215 = sbr.rel (0) target = $region37
    $region36: #{tpu_custom_call.1} parent=1 // pred_region
      %216 = dma.done [#allocation4], 32
    $region37: #{tpu_custom_call.1} parent=1 // pred_fallthru
      _
    // Predicated region
    $region38: #{tpu_custom_call.1} parent=1 // pred_check
      _
    $region39: #{tpu_custom_call.1} parent=1 // pred_check_branch
      %218 = sbr.rel (0) target = $region41
    $region40: #{tpu_custom_call.1} parent=1 // pred_region
      %219 = dma.done [#allocation11], 32
    $region41: #{tpu_custom_call.1} parent=1 // pred_fallthru
      _
    %220 = vsyncpa [#allocation3], 1
    %221 = vsyncpa [#allocation7], 1
    %222 = vsyncpa [#allocation4], 1
    %223 = vsyncpa [#allocation11], 1
    %224 = vsyncpa [#allocation5], 1

</llo_original>
